<compile_context>
chip_gen: v6e
topology: v6e:2x2x1
jax: 0.10.0
libtpu: 0.0.40
codegen_flags: <defaults>
</compile_context>

<pallas_src>
import jax
import jax.numpy as jnp
from jax.experimental import pallas as pl
from jax.experimental.pallas import tpu as pltpu


def _round_up(x, m):
    return ((x + m - 1) // m) * m


def _pick_tile(n, requested, min_panels=1):
    """Largest power-of-two tile <= `requested` that divides n (n % 128 == 0),
    preferring at least `min_panels` tiles along the axis (megacore sharding)."""
    cands = [c for c in (4096, 2048, 1024, 512, 256, 128) if c <= requested]
    if not cands:
        cands = [128]
    for c in cands:                       # honor the panel-count preference
        if c * min_panels <= n and n % c == 0:
            return c
    for c in cands:                       # tiny graphs: drop the preference
        if c <= n and n % c == 0:
            return c
    return min(n, 128)


# ---------------------------------------------------------------------------
# Fused kernel: out = adj @ (x @ W.T) + b   (K-tiled, f32 accumulator)
# ---------------------------------------------------------------------------
def gcn_fused_kernel(adj_ref, x_ref, wt_ref, b_ref, o_ref, acc_ref):
    # adj_ref: (tm, tk)      streamed adjacency tile       (compute dtype)
    # x_ref:   (tk, F_in)    streamed node-feature tile    (compute dtype)
    # wt_ref:  (F_in, F_pad) resident, lane-padded W.T     (compute dtype)
    # b_ref:   (1, F_pad)    f32 bias (zero-padded)
    # o_ref:   (tm, F_pad)   output tile
    # acc_ref: (tm, F_pad)   f32 accumulator scratch
    k = pl.program_id(1)

    @pl.when(k == 0)
    def _():
        # out = b + sum_k adj_k @ (x_k @ W.T): fold bias into accumulator init.
        acc_ref[...] = jnp.broadcast_to(b_ref[...], acc_ref.shape).astype(jnp.float32)

    # xw tile recomputed on the fly (free while HBM-bound on the N^2 adj read).
    xw = jnp.dot(x_ref[...], wt_ref[...], preferred_element_type=jnp.float32)
    acc_ref[...] += jnp.dot(adj_ref[...], xw.astype(adj_ref.dtype),
                            preferred_element_type=jnp.float32)

    @pl.when(k == pl.num_programs(1) - 1)
    def _():
        o_ref[...] = acc_ref[...].astype(o_ref.dtype)


# ---------------------------------------------------------------------------
# Wrapper
# ---------------------------------------------------------------------------
def gcn_layer(adj, x, w, b, *, tm=1024, tk=2048,
              compute_dtype=jnp.bfloat16, out_dtype=None):
    """out = (adj @ x) @ w.T + b, computed fused as adj @ (x @ w.T) + b.

    adj: (N, N)       dense adjacency (spmm == dense matmul semantics)
    x:   (N, F_in)
    w:   (F_out, F_in)  nn.Linear weight convention
    b:   (F_out,)
    """
    N, F_in = x.shape
    F_out = w.shape[0]
    assert adj.shape == (N, N)
    assert b.shape == (F_out,)
    out_dtype = out_dtype or x.dtype

    # ---- Host-side layout prep -------------------------------------------
    # Lane-dense output: pad F_out to a multiple of 128 (zero columns).
    F_pad = _round_up(F_out, 128)
    wt = jnp.zeros((F_in, F_pad), dtype=jnp.float32).at[:, :F_out].set(
        w.astype(jnp.float32).T)
    b2 = jnp.zeros((1, F_pad), dtype=jnp.float32).at[:, :F_out].set(
        b.astype(jnp.float32))

    # Zero-pad N to a multiple of 128 so any graph size works (zero adjacency
    # rows/cols and zero feature rows are mathematically inert).
    N_pad = _round_up(N, 128)
    adj_c = adj.astype(compute_dtype)
    x_c = x.astype(compute_dtype)
    wt_c = wt.astype(compute_dtype)
    if N_pad != N:
        adj_c = jnp.pad(adj_c, ((0, N_pad - N), (0, N_pad - N)))
        x_c = jnp.pad(x_c, ((0, N_pad - N), (0, 0)))

    # ---- Tile selection (>= 2 row panels keeps both v7x TensorCores busy) --
    tm = _pick_tile(N_pad, tm, min_panels=2)
    tk = _pick_tile(N_pad, tk, min_panels=1)
    grid = (N_pad // tm, N_pad // tk)       # reduction axis last

    # ---- VMEM budget (double-buffered streams + f32 accumulator) ----------
    bc = jnp.dtype(compute_dtype).itemsize
    bo = jnp.dtype(out_dtype).itemsize
    footprint = (2 * tm * tk * bc            # adj (double-buffered)
                 + 2 * tk * F_in * bc        # x   (double-buffered)
                 + 2 * F_in * F_pad * bc     # W.T (constant block)
                 + 2 * F_pad * 4             # bias
                 + tm * F_pad * 4            # f32 accumulator scratch
                 + 2 * tm * F_pad * bo)      # out (double-buffered)
    # ~2x headroom, but stay <= 48 MiB so it also fits v7x's 64 MiB VMEM.
    vmem_limit = int(min(max(2 * footprint, 32 << 20), 48 << 20))

    cost = pl.CostEstimate(
        flops=2 * N_pad * N_pad * F_pad + 2 * grid[0] * N_pad * F_in * F_pad,
        transcendentals=0,
        bytes_accessed=(N_pad * N_pad * bc              # adj streamed once
                        + grid[0] * N_pad * F_in * bc   # x re-streamed / row panel
                        + F_in * F_pad * bc             # resident W.T
                        + N_pad * F_pad * bo),          # output
    )

    out_padded = pl.pallas_call(
        gcn_fused_kernel,
        out_shape=jax.ShapeDtypeStruct((N_pad, F_pad), out_dtype),
        grid_spec=pltpu.PrefetchScalarGridSpec(
            num_scalar_prefetch=0,
            grid=grid,
            in_specs=[
                pl.BlockSpec((tm, tk), lambda i, k: (i, k)),       # adj tile
                pl.BlockSpec((tk, F_in), lambda i, k: (k, 0)),     # x tile
                pl.BlockSpec((F_in, F_pad), lambda i, k: (0, 0)),  # W.T (resident)
                pl.BlockSpec((1, F_pad), lambda i, k: (0, 0)),     # bias
            ],
            out_specs=pl.BlockSpec((tm, F_pad), lambda i, k: (i, 0)),
            scratch_shapes=[pltpu.VMEM((tm, F_pad), jnp.float32)],
        ),
        compiler_params=pltpu.CompilerParams(
            dimension_semantics=("parallel", "arbitrary"),
            vmem_limit_bytes=vmem_limit),
        cost_estimate=cost,
    )(adj_c, x_c, wt_c, b2)

    # TODO(synk): for very wide layers (F_in * F_pad too large for a resident
    #   W.T block) add an F_in reduction tile instead of keeping W.T resident.
    # TODO(synk): optional fp8 (v7x) / int8+per-row-scale (v5e/v6e) streaming of
    #   adj would halve the dominant N^2 HBM read again if accuracy allows.
    return out_padded[:N, :F_out]


def gcn_layer_ref(adj, x, w, b):
    return (adj @ x) @ w.T + b[None, :]


if __name__ == "__main__":
    # Small deterministic example: 300-node graph, 64 -> 32 features.
    # N is deliberately NOT a multiple of 128 to exercise the padding path,
    # and small enough that the grid still has multiple row panels + k steps.
    N, F_in, F_out = 300, 64, 32

    key = jax.random.PRNGKey(0)
    k_adj, k_x, k_w, k_b = jax.random.split(key, 4)

    # Row-normalized sparse-ish dense adjacency with self loops.
    adj = jax.random.uniform(k_adj, (N, N), dtype=jnp.float32)
    adj = (adj < 0.1).astype(jnp.float32) + jnp.eye(N, dtype=jnp.float32)
    adj = adj / jnp.sum(adj, axis=1, keepdims=True)

    x = jax.random.normal(k_x, (N, F_in), dtype=jnp.float32)

    # nn.Linear-style init: U(-1/sqrt(in), 1/sqrt(in)).
    bound = 1.0 / (F_in ** 0.5)
    w = jax.random.uniform(k_w, (F_out, F_in), minval=-bound, maxval=bound,
                           dtype=jnp.float32)
    b = jax.random.uniform(k_b, (F_out,), minval=-bound, maxval=bound,
                           dtype=jnp.float32)

    ref = gcn_layer_ref(adj, x, w, b)

    # f32 streaming path: exact check against the PyTorch-convention reference.
    out_f32 = jax.block_until_ready(
        gcn_layer(adj, x, w, b, compute_dtype=jnp.float32))
    assert out_f32.shape == (N, F_out)
    assert jnp.allclose(out_f32, ref, atol=1e-4, rtol=1e-4), "f32 mismatch vs reference"

    # bf16 streaming path (f32 MXU accumulation): looser tolerance.
    out_bf16 = jax.block_until_ready(
        gcn_layer(adj, x, w, b, compute_dtype=jnp.bfloat16))
    assert out_bf16.shape == (N, F_out)
    assert jnp.allclose(out_bf16, ref, atol=3e-2, rtol=3e-2), "bf16 mismatch vs reference"

    print("KERNEL_OK")
</pallas_src>

<mosaic_0001>
module attributes {stable_mosaic.version = 11 : i64} {
  func.func @gcn_fused_kernel(%arg0: i32, %arg1: i32, %arg2: memref<128x128xf32, #tpu.memory_space<vmem>>, %arg3: memref<128x64xf32, #tpu.memory_space<vmem>>, %arg4: memref<64x128xf32, #tpu.memory_space<vmem>>, %arg5: memref<1x128xf32, #tpu.memory_space<vmem>>, %arg6: memref<128x128xf32, #tpu.memory_space<vmem>>, %arg7: memref<128x128xf32, #tpu.memory_space<vmem>>) attributes {dimension_semantics = [#tpu.dimension_semantics<parallel>, #tpu.dimension_semantics<arbitrary>], iteration_bounds = array<i64: 3, 3>, scalar_prefetch = 0 : i64, scratch_operands = 1 : i64, tpu.core_type = #tpu.core_type<tc>, window_params = [{transform_indices = @transform_0, window_bounds = array<i64: 128, 128>}, {transform_indices = @transform_1, window_bounds = array<i64: 128, 64>}, {pipeline_mode = #tpu.pipeline_mode<synchronous>, transform_indices = @transform_2, window_bounds = array<i64: 64, 128>}, {pipeline_mode = #tpu.pipeline_mode<synchronous>, transform_indices = @transform_3, window_bounds = array<i64: 1, 128>}, {transform_indices = @transform_4, window_bounds = array<i64: 128, 128>}]} {
    %c0_i32 = arith.constant 0 : i32
    %0 = arith.cmpi eq, %arg1, %c0_i32 : i32
    %1 = arith.extui %0 : i1 to i32
    %c0_i32_0 = arith.constant 0 : i32
    %2 = arith.cmpi ne, %1, %c0_i32_0 : i32
    scf.if %2 {
      %c0_12 = arith.constant 0 : index
      %c0_13 = arith.constant 0 : index
      %14 = vector.load %arg5[%c0_12, %c0_13] : memref<1x128xf32, #tpu.memory_space<vmem>>, vector<1x128xf32>
      %15 = vector.shape_cast %14 : vector<1x128xf32> to vector<1x128xf32>
      %16 = vector.broadcast %15 : vector<1x128xf32> to vector<128x128xf32>
      %c0_14 = arith.constant 0 : index
      %c0_15 = arith.constant 0 : index
      %17 = vector.load %arg7[%c0_14, %c0_15] : memref<128x128xf32, #tpu.memory_space<vmem>>, vector<128x128xf32>
      tpu.vector_store %arg7[%c0_14, %c0_15], %16 {strides = array<i32>} : memref<128x128xf32, #tpu.memory_space<vmem>>, vector<128x128xf32>,
    } else {
    }
    %c0 = arith.constant 0 : index
    %c0_1 = arith.constant 0 : index
    %3 = vector.load %arg3[%c0, %c0_1] : memref<128x64xf32, #tpu.memory_space<vmem>>, vector<128x64xf32>
    %c0_2 = arith.constant 0 : index
    %c0_3 = arith.constant 0 : index
    %4 = vector.load %arg4[%c0_2, %c0_3] : memref<64x128xf32, #tpu.memory_space<vmem>>, vector<64x128xf32>
    %cst = arith.constant dense<0.000000e+00> : vector<128x128xf32>
    %5 = tpu.matmul %3, %4, %cst {dimension_numbers = #tpu.dot_dimension_numbers<[1], [0], [0], [1], [0, 0, 1, 1], [], []>} : vector<128x64xf32>, vector<64x128xf32>, vector<128x128xf32> -> vector<128x128xf32>
    %c0_4 = arith.constant 0 : index
    %c0_5 = arith.constant 0 : index
    %6 = vector.load %arg7[%c0_4, %c0_5] : memref<128x128xf32, #tpu.memory_space<vmem>>, vector<128x128xf32>
    %c0_6 = arith.constant 0 : index
    %c0_7 = arith.constant 0 : index
    %7 = vector.load %arg2[%c0_6, %c0_7] : memref<128x128xf32, #tpu.memory_space<vmem>>, vector<128x128xf32>
    %cst_8 = arith.constant dense<0.000000e+00> : vector<128x128xf32>
    %8 = tpu.matmul %7, %5, %cst_8 {dimension_numbers = #tpu.dot_dimension_numbers<[1], [0], [0], [1], [0, 0, 1, 1], [], []>} : vector<128x128xf32>, vector<128x128xf32>, vector<128x128xf32> -> vector<128x128xf32>
    %9 = arith.addf %6, %8 : vector<128x128xf32>
    %c0_9 = arith.constant 0 : index
    %c0_10 = arith.constant 0 : index
    %10 = vector.load %arg7[%c0_9, %c0_10] : memref<128x128xf32, #tpu.memory_space<vmem>>, vector<128x128xf32>
    tpu.vector_store %arg7[%c0_9, %c0_10], %9 {strides = array<i32>} : memref<128x128xf32, #tpu.memory_space<vmem>>, vector<128x128xf32>,
    %c2_i32 = arith.constant 2 : i32
    %11 = arith.cmpi eq, %arg1, %c2_i32 : i32
    %12 = arith.extui %11 : i1 to i32
    %c0_i32_11 = arith.constant 0 : i32
    %13 = arith.cmpi ne, %12, %c0_i32_11 : i32
    scf.if %13 {
      %c0_12 = arith.constant 0 : index
      %c0_13 = arith.constant 0 : index
      %14 = vector.load %arg7[%c0_12, %c0_13] : memref<128x128xf32, #tpu.memory_space<vmem>>, vector<128x128xf32>
      %c0_14 = arith.constant 0 : index
      %c0_15 = arith.constant 0 : index
      %15 = vector.load %arg6[%c0_14, %c0_15] : memref<128x128xf32, #tpu.memory_space<vmem>>, vector<128x128xf32>
      tpu.vector_store %arg6[%c0_14, %c0_15], %14 {strides = array<i32>} : memref<128x128xf32, #tpu.memory_space<vmem>>, vector<128x128xf32>,
    } else {
    }
    return
  }
  func.func @transform_0(%arg0: i32, %arg1: i32) -> (i32, i32) {
    %c0_i32 = arith.constant 0 : i32
    return %arg0, %arg1 : i32, i32
  }
  func.func @transform_1(%arg0: i32, %arg1: i32) -> (i32, i32) {
    %c0_i32 = arith.constant 0 : i32
    %c0_i32_0 = arith.constant 0 : i32
    return %arg1, %c0_i32 : i32, i32
  }
  func.func @transform_2(%arg0: i32, %arg1: i32) -> (i32, i32) {
    %c0_i32 = arith.constant 0 : i32
    %c0_i32_0 = arith.constant 0 : i32
    %c0_i32_1 = arith.constant 0 : i32
    return %c0_i32, %c0_i32_0 : i32, i32
  }
  func.func @transform_3(%arg0: i32, %arg1: i32) -> (i32, i32) {
    %c0_i32 = arith.constant 0 : i32
    %c0_i32_0 = arith.constant 0 : i32
    %c0_i32_1 = arith.constant 0 : i32
    return %c0_i32, %c0_i32_0 : i32, i32
  }
  func.func @transform_4(%arg0: i32, %arg1: i32) -> (i32, i32) {
    %c0_i32 = arith.constant 0 : i32
    %c0_i32_0 = arith.constant 0 : i32
    return %arg0, %c0_i32 : i32, i32
  }
}

</mosaic_0001>

<llo_original>
// kernel: tpu_custom_call.1
$region0: #{tpu_custom_call.1}
  #allocation0 [shape = 'u32[]', space=smem, size = 0x4, offset = 0x4, fixed_abs, tag = 'smem constant byte address 0x4 - core index']
  #allocation1 [shape = 'u32[144,128]{1,0:T(1,128)}', space=vmem, size = 0x12000, scoped, tag = 'internal scratch']
  #allocation2 [shape = 'f32[128,128]{1,0:T(8,128)}', space=vmem, size = 0x10000, scoped, tag = 'scratch operand']
  %s0 = inlined_call_operand.hbm [shape: f32[384,384], index: 0, kind: input, shape index: {}]
  %s1 = inlined_call_operand.vmem [shape: f32[384,64], index: 1, kind: input, shape index: {}]
  %s2 = inlined_call_operand.vmem [shape: f32[64,128], index: 2, kind: input, shape index: {}]
  %s3 = inlined_call_operand.vmem [shape: f32[1,128], index: 3, kind: input, shape index: {}]
  %s4 = inlined_call_operand.hbm [shape: f32[384,128], index: 4, kind: output, shape index: {}]
  %s5 = sld [smem:[#allocation0]]
  $region61: #{tpu_custom_call.1} parent=0
    _
  %s7 = ssub.s32 1, %s5
  %s8 = scalar_select 0, %s7, %s5
  $region1: #{tpu_custom_call.1} parent=0
    #allocation3 [shape = 'u8[131072]{0}', space=vmem, size = 0x20000, scoped, tag = 'input window, operand 0']
    #allocation4 [shape = 's32[2]{0}', space=sflag, size = 0x8, scoped, tag = 'scoped memory for tpu_custom_call.1']
    #allocation5 [shape = 's32[2]{0}', space=sflag, size = 0x8, scoped, tag = 'scoped memory for tpu_custom_call.1']
    #allocation6 [shape = 'u8[131072]{0}', space=vmem, size = 0x20000, scoped, tag = 'output window, operand 0']
    %9 = vsyncpa [#allocation4], 0
    %s10 = scalar_lea.sflag [#allocation4], 1
    %11 = vsyncpa %s10, 0
    %12 = vsyncpa [#allocation5], 0
    %s13 = scalar_lea.sflag [#allocation5], 1
    %14 = vsyncpa %s13, 0
    loop: start=0, step=1, limit=11
    $region2: #{tpu_custom_call.1} parent=1 // loop_pre_header
      _
    $region3: #{tpu_custom_call.1} parent=1 // loop_header
      %s16 = sphi 0, %s20
      %p17 = scmp.ge.s32.totalorder %s16, 11
      %s23 = sphi 0, %s35
      %s24 = sphi 0, %s31
      %s25 = sphi 0, %s23
      %s26 = sphi 0, %s24
      %s27 = sphi 0, %s25
      %s28 = sphi 0, %s26
      %s40 = sphi 0, %s42
      %s43 = sphi 0, %s40
      %s44 = sphi 0, %s43
      %s60 = sphi 0, %s44
      %s66 = sphi 0, %s68
      %s69 = sphi 0, %s66
      %s70 = sphi 0, %s69
      %s86 = sphi 0, %s70
      %s90 = sphi 0, %s90
      %s92 = sphi 0, %s90
      %s93 = sphi 0, %s92
      %s107 = sphi 0, %s93
      %s111 = sphi 0, %s111
      %s113 = sphi 0, %s111
      %s114 = sphi 0, %s113
      %s128 = sphi 0, %s114
      %s134 = sphi 0, %s136
      %s137 = sphi 0, %s134
      %s138 = sphi 0, %s137
      %s154 = sphi 0, %s138
    $region4: #{tpu_custom_call.1} parent=1 // loop_header_branch
      %19 = sbr.rel (%p17) target = $region8
    $region5: #{tpu_custom_call.1} parent=1 // loop_body
      %s21 = ssub.s32 %s16, 1
      %s22 = ssub.s32 %s16, 2
      %s29 = sadd.s32 1, %s24
      %p30 = scmp.ge.s32.totalorder %s29, 3
      %s31 = scalar_select %p30, 0, %s29
      %s32 = sadd.s32 1, %s23
      %s33 = scalar_select %p30, %s32, %s23
      %p34 = scmp.ge.s32.totalorder %s33, 3
      %s35 = scalar_select %p34, 0, %s33
      %s36 = ssub.s32 %s23, %s35
      %s37 = ssub.s32 %s24, %s31
      %s38 = sor.u32 %s36, %s37
      %p39 = scmp.eq.s32.totalorder %s38, 0
      %s41 = sadd.s32 %s40, 1
      %s42 = scalar_select %p39, %s40, %s41
      %p45 = pneg %p39
      %p46 = scmp.eq.s32.totalorder %s16, 8
      %p47 = por %p45, %p46
      %p48 = scmp.ne.s32.totalorder %s40, %s43
      %p49 = scmp.eq.s32.totalorder %s16, 0
      %p50 = por %p48, %p49
      %p51 = scmp.ne.s32.totalorder %s40, %s43
      %p52 = scmp.eq.s32.totalorder %s21, 8
      %p53 = por %p51, %p52
      %p54 = scmp.ne.s32.totalorder %s43, %s44
      %p55 = scmp.eq.s32.totalorder %s21, 0
      %p56 = por %p54, %p55
      %p57 = scmp.ne.s32.totalorder %s43, %s44
      %p58 = scmp.eq.s32.totalorder %s22, 8
      %p59 = por %p57, %p58
      %p61 = scmp.ne.s32.totalorder %s44, %s60
      %p62 = scmp.eq.s32.totalorder %s22, 0
      %p63 = por %p61, %p62
      %s64 = ssub.s32 %s24, %s31
      %p65 = scmp.eq.s32.totalorder %s64, 0
      %s67 = sadd.s32 %s66, 1
      %s68 = scalar_select %p65, %s66, %s67
      %p71 = pneg %p65
      %p72 = scmp.eq.s32.totalorder %s16, 8
      %p73 = por %p71, %p72
      %p74 = scmp.ne.s32.totalorder %s66, %s69
      %p75 = scmp.eq.s32.totalorder %s16, 0
      %p76 = por %p74, %p75
      %p77 = scmp.ne.s32.totalorder %s66, %s69
      %p78 = scmp.eq.s32.totalorder %s21, 8
      %p79 = por %p77, %p78
      %p80 = scmp.ne.s32.totalorder %s69, %s70
      %p81 = scmp.eq.s32.totalorder %s21, 0
      %p82 = por %p80, %p81
      %p83 = scmp.ne.s32.totalorder %s69, %s70
      %p84 = scmp.eq.s32.totalorder %s22, 8
      %p85 = por %p83, %p84
      %p87 = scmp.ne.s32.totalorder %s70, %s86
      %p88 = scmp.eq.s32.totalorder %s22, 0
      %p89 = por %p87, %p88
      %s91 = sadd.s32 %s90, 1
      %p94 = scmp.eq.s32.totalorder %s16, 8
      %p95 = scmp.ne.s32.totalorder %s90, %s92
      %p96 = scmp.eq.s32.totalorder %s16, 0
      %p97 = por %p95, %p96
      %p98 = scmp.ne.s32.totalorder %s90, %s92
      %p99 = scmp.eq.s32.totalorder %s21, 8
      %p100 = por %p98, %p99
      %p101 = scmp.ne.s32.totalorder %s92, %s93
      %p102 = scmp.eq.s32.totalorder %s21, 0
      %p103 = por %p101, %p102
      %p104 = scmp.ne.s32.totalorder %s92, %s93
      %p105 = scmp.eq.s32.totalorder %s22, 8
      %p106 = por %p104, %p105
      %p108 = scmp.ne.s32.totalorder %s93, %s107
      %p109 = scmp.eq.s32.totalorder %s22, 0
      %p110 = por %p108, %p109
      %s112 = sadd.s32 %s111, 1
      %p115 = scmp.eq.s32.totalorder %s16, 8
      %p116 = scmp.ne.s32.totalorder %s111, %s113
      %p117 = scmp.eq.s32.totalorder %s16, 0
      %p118 = por %p116, %p117
      %p119 = scmp.ne.s32.totalorder %s111, %s113
      %p120 = scmp.eq.s32.totalorder %s21, 8
      %p121 = por %p119, %p120
      %p122 = scmp.ne.s32.totalorder %s113, %s114
      %p123 = scmp.eq.s32.totalorder %s21, 0
      %p124 = por %p122, %p123
      %p125 = scmp.ne.s32.totalorder %s113, %s114
      %p126 = scmp.eq.s32.totalorder %s22, 8
      %p127 = por %p125, %p126
      %p129 = scmp.ne.s32.totalorder %s114, %s128
      %p130 = scmp.eq.s32.totalorder %s22, 0
      %p131 = por %p129, %p130
      %s132 = ssub.s32 %s23, %s35
      %p133 = scmp.eq.s32.totalorder %s132, 0
      %s135 = sadd.s32 %s134, 1
      %s136 = scalar_select %p133, %s134, %s135
      %p139 = pneg %p133
      %p140 = scmp.eq.s32.totalorder %s16, 8
      %p141 = por %p139, %p140
      %p142 = scmp.ne.s32.totalorder %s134, %s137
      %p143 = scmp.eq.s32.totalorder %s16, 0
      %p144 = por %p142, %p143
      %p145 = scmp.ne.s32.totalorder %s134, %s137
      %p146 = scmp.eq.s32.totalorder %s21, 8
      %p147 = por %p145, %p146
      %p148 = scmp.ne.s32.totalorder %s137, %s138
      %p149 = scmp.eq.s32.totalorder %s21, 0
      %p150 = por %p148, %p149
      %p151 = scmp.ne.s32.totalorder %s137, %s138
      %p152 = scmp.eq.s32.totalorder %s22, 8
      %p153 = por %p151, %p152
      %p155 = scmp.ne.s32.totalorder %s138, %s154
      %p156 = scmp.eq.s32.totalorder %s22, 0
      %p157 = por %p155, %p156
      %p158 = scmp.le.s32.totalorder 1, %s16
      %p159 = scmp.lt.s32.totalorder %s16, 10
      %p160 = pnand %p158, %p159
      %p161 = pneg %p160
      // Predicated region
      $region9: #{tpu_custom_call.1} parent=5 // pred_check
        _
      $region10: #{tpu_custom_call.1} parent=5 // pred_check_branch
        %163 = sbr.rel (%p160) target = $region12
      $region11: #{tpu_custom_call.1} parent=5 // pred_region
        %s164 = ssub.s32 %s16, 1
        // Predicated region
        $region13: #{tpu_custom_call.1} parent=11 // pred_check
          %p165 = pneg %p103
        $region14: #{tpu_custom_call.1} parent=11 // pred_check_branch
          %167 = sbr.rel (%p165) target = $region16
        $region15: #{tpu_custom_call.1} parent=11 // pred_region
          _
        $region16: #{tpu_custom_call.1} parent=11 // pred_fallthru
          _
        // Predicated region
        $region17: #{tpu_custom_call.1} parent=11 // pred_check
          %p168 = pneg %p124
        $region18: #{tpu_custom_call.1} parent=11 // pred_check_branch
          %170 = sbr.rel (%p168) target = $region20
        $region19: #{tpu_custom_call.1} parent=11 // pred_region
          _
        $region20: #{tpu_custom_call.1} parent=11 // pred_fallthru
          _
      $region12: #{tpu_custom_call.1} parent=5 // pred_fallthru
        _
      %p171 = scmp.lt.s32.totalorder %s16, 9
      // Predicated region
      $region21: #{tpu_custom_call.1} parent=5 // pred_check
        %p172 = pneg %p171
      $region22: #{tpu_custom_call.1} parent=5 // pred_check_branch
        %174 = sbr.rel (%p172) target = $region24
      $region23: #{tpu_custom_call.1} parent=5 // pred_region
        // Predicated region
        $region25: #{tpu_custom_call.1} parent=23 // pred_check
          %p175 = pneg %p50
        $region26: #{tpu_custom_call.1} parent=23 // pred_check_branch
          %177 = sbr.rel (%p175) target = $region28
        $region27: #{tpu_custom_call.1} parent=23 // pred_region
          %s178 = sand.u32 %s40, 1
          %s179 = scalar_lea.sflag [#allocation4], %s178
          %s180 = sand.u32 %s40, 1
          %s181 = smul.addr %s180, 128
          %s182 = scalar_lea.vmem [#allocation3], %s181
          %s183 = smul.u32 16, %s23
          %s185 = ssub.s32 2048, 2048
          %186 = vsyncadd %s179, %s185
          %s187 = smul.addr %s183, 3
          %s188 = sadd.s32 %s24, %s187
          %s189 = smul.addr %s188, 128
          %s190 = scalar_lea.hbm %s0, %s189
          %s191 = sshll.u32 %s182, 4
          %s192 = int_to_ptr.vmem [resolvable:$true] %s191
          %197 = dma.hbm_to_vmem [thread:$0]  %s190, 2048, %s192, %s179, 384, 128, 8
        $region28: #{tpu_custom_call.1} parent=23 // pred_fallthru
          _
        // Predicated region
        $region29: #{tpu_custom_call.1} parent=23 // pred_check
          %p198 = pneg %p76
        $region30: #{tpu_custom_call.1} parent=23 // pred_check_branch
          %200 = sbr.rel (%p198) target = $region32
        $region31: #{tpu_custom_call.1} parent=23 // pred_region
          %s201 = smul.u32 16, %s24
          %p202 = scmp.lt.s32.totalorder %s201, 47
          %s203 = scalar_select %p202, %s201, 47
          %s204 = smul.addr %s203, 8
          %s205 = scalar_lea.vmem %s1, %s204
          %s206 = smul.u32 16, %s24
        $region32: #{tpu_custom_call.1} parent=23 // pred_fallthru
          _
      $region24: #{tpu_custom_call.1} parent=5 // pred_fallthru
        _
      %p207 = scmp.le.s32.totalorder 1, %s16
      %p208 = scmp.lt.s32.totalorder %s16, 10
      %p209 = pnand %p207, %p208
      %p210 = pneg %p209
      // Predicated region
      $region33: #{tpu_custom_call.1} parent=5 // pred_check
        _
      $region34: #{tpu_custom_call.1} parent=5 // pred_check_branch
        %212 = sbr.rel (%p209) target = $region36
      $region35: #{tpu_custom_call.1} parent=5 // pred_region
        %s213 = ssub.s32 %s16, 1
        %s214 = sand.u32 %s43, 1
        %s215 = scalar_lea.sflag [#allocation4], %s214
        %s216 = sand.u32 %s43, 1
        %s217 = smul.addr %s216, 128
        %s218 = scalar_lea.vmem [#allocation3], %s217
        // Predicated region
        $region37: #{tpu_custom_call.1} parent=35 // pred_check
          %p219 = pneg %p56
        $region38: #{tpu_custom_call.1} parent=35 // pred_check_branch
          %221 = sbr.rel (%p219) target = $region40
        $region39: #{tpu_custom_call.1} parent=35 // pred_region
          %222 = dma.done %s215, 2048
        $region40: #{tpu_custom_call.1} parent=35 // pred_fallthru
          _
        %s223 = sand.u32 %s43, 1
        %s224 = scalar_lea.sflag [#allocation4], %s223
        %s225 = sand.u32 %s43, 1
        %s226 = smul.addr %s225, 128
        %s227 = scalar_lea.vmem [#allocation3], %s226
        %p228 = pneg %p56
        %p229 = pneg %p53
        %s230 = smul.u32 16, %s26
        %p231 = scmp.lt.s32.totalorder %s230, 47
        %s232 = scalar_select %p231, %s230, 47
        %s233 = smul.addr %s232, 8
        %s234 = scalar_lea.vmem %s1, %s233
        %p235 = pneg %p82
        %p236 = pneg %p79
        %p237 = pneg %p103
        %p238 = pneg %p100
        %p239 = pneg %p124
        %p240 = pneg %p121
        %p241 = pneg %p150
        %p242 = pneg %p147
        %s243 = sand.u32 %s137, 1
        %s244 = scalar_lea.sflag [#allocation5], %s243
        %s245 = sand.u32 %s137, 1
        %s246 = smul.addr %s245, 128
        %s247 = scalar_lea.vmem [#allocation6], %s246
        %s248 = smul.u32 16, %s25
        %s249 = smul.u32 16, %s26
        %p250 = scmp.lt.s32.totalorder %s249, 47
        %s251 = scalar_select %p250, %s249, 47
        %s252 = smul.addr %s251, 8
        %s253 = scalar_lea.vmem %s1, %s252
        %s254 = smul.u32 16, %s26
        %s255 = smul.u32 16, %s25
        %p256 = scmp.eq.s32.totalorder %s26, 0
        // Predicated region
        $region41: #{tpu_custom_call.1} parent=35 // pred_check
          %p257 = pneg %p256
        $region42: #{tpu_custom_call.1} parent=35 // pred_check_branch
          %259 = sbr.rel (%p257) target = $region44
        $region43: #{tpu_custom_call.1} parent=35 // pred_region
          %v260 = vld [vmem:[%s3] sm:$0x1]
          %v262 = vlaneseq
          %v263 = vshrl.u32 %v262, 7
          %v264 = vsub.s32 0, %v263
          %v265 = vrot.slane %v260, %v264
          %267 = vst [vmem:[#allocation2] sm:$0xff] %v265
          %268 = vst [vmem:[#allocation2 + $0x8] sm:$0xff] %v265
          %269 = vst [vmem:[#allocation2 + $0x10] sm:$0xff] %v265
          %270 = vst [vmem:[#allocation2 + $0x18] sm:$0xff] %v265
          %271 = vst [vmem:[#allocation2 + $0x20] sm:$0xff] %v265
          %272 = vst [vmem:[#allocation2 + $0x28] sm:$0xff] %v265
          %273 = vst [vmem:[#allocation2 + $0x30] sm:$0xff] %v265
          %274 = vst [vmem:[#allocation2 + $0x38] sm:$0xff] %v265
          %275 = vst [vmem:[#allocation2 + $0x40] sm:$0xff] %v265
          %276 = vst [vmem:[#allocation2 + $0x48] sm:$0xff] %v265
          %277 = vst [vmem:[#allocation2 + $0x50] sm:$0xff] %v265
          %278 = vst [vmem:[#allocation2 + $0x58] sm:$0xff] %v265
          %279 = vst [vmem:[#allocation2 + $0x60] sm:$0xff] %v265
          %280 = vst [vmem:[#allocation2 + $0x68] sm:$0xff] %v265
          %281 = vst [vmem:[#allocation2 + $0x70] sm:$0xff] %v265
          %282 = vst [vmem:[#allocation2 + $0x78] sm:$0xff] %v265
        $region44: #{tpu_custom_call.1} parent=35 // pred_fallthru
          _
        %v283 = vld [vmem:[%s253] sm:$0xff]
        %v284 = vld [vmem:[%s253 + $0x8] sm:$0xff]
        %v285 = vld [vmem:[%s253 + $0x10] sm:$0xff]
        %v286 = vld [vmem:[%s253 + $0x18] sm:$0xff]
        %v287 = vld [vmem:[%s253 + $0x20] sm:$0xff]
        %v288 = vld [vmem:[%s253 + $0x28] sm:$0xff]
        %v289 = vld [vmem:[%s253 + $0x30] sm:$0xff]
        %v290 = vld [vmem:[%s253 + $0x38] sm:$0xff]
        %v291 = vld [vmem:[%s253 + $0x40] sm:$0xff]
        %v292 = vld [vmem:[%s253 + $0x48] sm:$0xff]
        %v293 = vld [vmem:[%s253 + $0x50] sm:$0xff]
        %v294 = vld [vmem:[%s253 + $0x58] sm:$0xff]
        %v295 = vld [vmem:[%s253 + $0x60] sm:$0xff]
        %v296 = vld [vmem:[%s253 + $0x68] sm:$0xff]
        %v297 = vld [vmem:[%s253 + $0x70] sm:$0xff]
        %v298 = vld [vmem:[%s253 + $0x78] sm:$0xff]
        %v299 = vld [vmem:[%s2] sm:$0xff]
        %v300 = vld [vmem:[%s2 + $0x8] sm:$0xff]
        %v301 = vld [vmem:[%s2 + $0x10] sm:$0xff]
        %v302 = vld [vmem:[%s2 + $0x18] sm:$0xff]
        %v303 = vld [vmem:[%s2 + $0x20] sm:$0xff]
        %v304 = vld [vmem:[%s2 + $0x28] sm:$0xff]
        %v305 = vld [vmem:[%s2 + $0x30] sm:$0xff]
        %v306 = vld [vmem:[%s2 + $0x38] sm:$0xff]
        %vm307 = vcmask 523264
        %v309 = vsel %vm307, %v283, 0
        %v312 = vsel %vm307, %v284, 0
        %v315 = vsel %vm307, %v285, 0
        %v318 = vsel %vm307, %v286, 0
        %v321 = vsel %vm307, %v287, 0
        %v324 = vsel %vm307, %v288, 0
        %v327 = vsel %vm307, %v289, 0
        %v330 = vsel %vm307, %v290, 0
        %v333 = vsel %vm307, %v291, 0
        %v336 = vsel %vm307, %v292, 0
        %v339 = vsel %vm307, %v293, 0
        %v342 = vsel %vm307, %v294, 0
        %v345 = vsel %vm307, %v295, 0
        %v348 = vsel %vm307, %v296, 0
        %v351 = vsel %vm307, %v297, 0
        %v354 = vsel %vm307, %v298, 0
        %356 = vmatprep.subr.mxu0 0.0
        %357 = vmatpush1.msra.mxu0 0.0
        %358 = vmatprep.subr.mxu0 0.0
        %359 = vmatpush1.msra.mxu0 0.0
        %360 = vmatprep.subr.mxu0 0.0
        %361 = vmatpush1.msra.mxu0 0.0
        %362 = vmatprep.subr.mxu0 0.0
        %363 = vmatpush1.msra.mxu0 0.0
        %364 = vmatprep.subr.mxu0 0.0
        %365 = vmatpush1.msra.mxu0 0.0
        %366 = vmatprep.subr.mxu0 0.0
        %367 = vmatpush1.msra.mxu0 0.0
        %368 = vmatprep.subr.mxu0 0.0
        %369 = vmatpush1.msra.mxu0 0.0
        %370 = vmatprep.subr.mxu0 0.0
        %371 = vmatpush1.msra.mxu0 0.0
        %372 = vmatprep.subr.mxu0 0.0
        %373 = vmatpush1.msra.mxu0 %v306
        %374 = vmatprep.subr.mxu0 0.0
        %375 = vmatpush1.msra.mxu0 %v305
        %376 = vmatprep.subr.mxu0 0.0
        %377 = vmatpush1.msra.mxu0 %v304
        %378 = vmatprep.subr.mxu0 0.0
        %379 = vmatpush1.msra.mxu0 %v303
        %380 = vmatprep.subr.mxu0 0.0
        %381 = vmatpush1.msra.mxu0 %v302
        %382 = vmatprep.subr.mxu0 0.0
        %383 = vmatpush1.msra.mxu0 %v301
        %384 = vmatprep.subr.mxu0 0.0
        %385 = vmatpush1.msra.mxu0 %v300
        %386 = vmatprep.subr.mxu0 0.0
        %387 = vmatpush1.msra.mxu0 %v299
        %388 = vmatprep.subr.mxu0 0.0
        %389 = vmatpush2.msra.mxu0 0.0
        %390 = vmatprep.subr.mxu0 0.0
        %391 = vmatpush2.msra.mxu0 0.0
        %392 = vmatprep.subr.mxu0 0.0
        %393 = vmatpush2.msra.mxu0 0.0
        %394 = vmatprep.subr.mxu0 0.0
        %395 = vmatpush2.msra.mxu0 0.0
        %396 = vmatprep.subr.mxu0 0.0
        %397 = vmatpush2.msra.mxu0 0.0
        %398 = vmatprep.subr.mxu0 0.0
        %399 = vmatpush2.msra.mxu0 0.0
        %400 = vmatprep.subr.mxu0 0.0
        %401 = vmatpush2.msra.mxu0 0.0
        %402 = vmatprep.subr.mxu0 0.0
        %403 = vmatpush2.msra.mxu0 0.0
        %404 = vmatprep.subr.mxu0 0.0
        %405 = vmatpush2.msra.mxu0 0.0
        %406 = vmatprep.subr.mxu0 0.0
        %407 = vmatpush2.msra.mxu0 0.0
        %408 = vmatprep.subr.mxu0 0.0
        %409 = vmatpush2.msra.mxu0 0.0
        %410 = vmatprep.subr.mxu0 0.0
        %411 = vmatpush2.msra.mxu0 0.0
        %412 = vmatprep.subr.mxu0 0.0
        %413 = vmatpush2.msra.mxu0 0.0
        %414 = vmatprep.subr.mxu0 0.0
        %415 = vmatpush2.msra.mxu0 0.0
        %416 = vmatprep.subr.mxu0 0.0
        %417 = vmatpush2.msra.mxu0 0.0
        %418 = vmatprep.subr.mxu0 0.0
        %419 = vmatpush2.msra.mxu0 0.0
        %420 = vmatprep.mubr.f32.mxu0 0.0
        %421 = vmatmul.mubr.f32.gmra.mxu0 %v309
        %v422 = vpop.f32.mrf.mxu0
        %v423 = vadd.f32 0.0, %v422
        %v424 = vpop.f32.mrf.mxu0
        %425 = vmatprep.mubr.f32.mxu0 0.0
        %426 = vmatmul.mubr.f32.gmra.mxu0 %v312
        %v427 = vpop.f32.mrf.mxu0
        %v428 = vadd.f32 0.0, %v427
        %v429 = vpop.f32.mrf.mxu0
        %430 = vmatprep.mubr.f32.mxu0 0.0
        %431 = vmatmul.mubr.f32.gmra.mxu0 %v315
        %v432 = vpop.f32.mrf.mxu0
        %v433 = vadd.f32 0.0, %v432
        %v434 = vpop.f32.mrf.mxu0
        %435 = vmatprep.mubr.f32.mxu0 0.0
        %436 = vmatmul.mubr.f32.gmra.mxu0 %v318
        %v437 = vpop.f32.mrf.mxu0
        %v438 = vadd.f32 0.0, %v437
        %v439 = vpop.f32.mrf.mxu0
        %440 = vmatprep.mubr.f32.mxu0 0.0
        %441 = vmatmul.mubr.f32.gmra.mxu0 %v321
        %v442 = vpop.f32.mrf.mxu0
        %v443 = vadd.f32 0.0, %v442
        %v444 = vpop.f32.mrf.mxu0
        %445 = vmatprep.mubr.f32.mxu0 0.0
        %446 = vmatmul.mubr.f32.gmra.mxu0 %v324
        %v447 = vpop.f32.mrf.mxu0
        %v448 = vadd.f32 0.0, %v447
        %v449 = vpop.f32.mrf.mxu0
        %450 = vmatprep.mubr.f32.mxu0 0.0
        %451 = vmatmul.mubr.f32.gmra.mxu0 %v327
        %v452 = vpop.f32.mrf.mxu0
        %v453 = vadd.f32 0.0, %v452
        %v454 = vpop.f32.mrf.mxu0
        %455 = vmatprep.mubr.f32.mxu0 0.0
        %456 = vmatmul.mubr.f32.gmra.mxu0 %v330
        %v457 = vpop.f32.mrf.mxu0
        %v458 = vadd.f32 0.0, %v457
        %v459 = vpop.f32.mrf.mxu0
        %460 = vmatprep.mubr.f32.mxu0 0.0
        %461 = vmatmul.mubr.f32.gmra.mxu0 %v333
        %v462 = vpop.f32.mrf.mxu0
        %v463 = vadd.f32 0.0, %v462
        %v464 = vpop.f32.mrf.mxu0
        %465 = vmatprep.mubr.f32.mxu0 0.0
        %466 = vmatmul.mubr.f32.gmra.mxu0 %v336
        %v467 = vpop.f32.mrf.mxu0
        %v468 = vadd.f32 0.0, %v467
        %v469 = vpop.f32.mrf.mxu0
        %470 = vmatprep.mubr.f32.mxu0 0.0
        %471 = vmatmul.mubr.f32.gmra.mxu0 %v339
        %v472 = vpop.f32.mrf.mxu0
        %v473 = vadd.f32 0.0, %v472
        %v474 = vpop.f32.mrf.mxu0
        %475 = vmatprep.mubr.f32.mxu0 0.0
        %476 = vmatmul.mubr.f32.gmra.mxu0 %v342
        %v477 = vpop.f32.mrf.mxu0
        %v478 = vadd.f32 0.0, %v477
        %v479 = vpop.f32.mrf.mxu0
        %480 = vmatprep.mubr.f32.mxu0 0.0
        %481 = vmatmul.mubr.f32.gmra.mxu0 %v345
        %v482 = vpop.f32.mrf.mxu0
        %v483 = vadd.f32 0.0, %v482
        %v484 = vpop.f32.mrf.mxu0
        %485 = vmatprep.mubr.f32.mxu0 0.0
        %486 = vmatmul.mubr.f32.gmra.mxu0 %v348
        %v487 = vpop.f32.mrf.mxu0
        %v488 = vadd.f32 0.0, %v487
        %v489 = vpop.f32.mrf.mxu0
        %490 = vmatprep.mubr.f32.mxu0 0.0
        %491 = vmatmul.mubr.f32.gmra.mxu0 %v351
        %v492 = vpop.f32.mrf.mxu0
        %v493 = vadd.f32 0.0, %v492
        %v494 = vpop.f32.mrf.mxu0
        %495 = vmatprep.mubr.f32.mxu0 0.0
        %496 = vmatmul.mubr.f32.gmra.mxu0 %v354
        %v497 = vpop.f32.mrf.mxu0
        %v498 = vadd.f32 0.0, %v497
        %v499 = vpop.f32.mrf.mxu0
        %500 = vdwg.mxu0
        %v501 = vld [vmem:[#allocation2] sm:$0xff]
        %v502 = vld [vmem:[#allocation2 + $0x8] sm:$0xff]
        %v503 = vld [vmem:[#allocation2 + $0x10] sm:$0xff]
        %v504 = vld [vmem:[#allocation2 + $0x18] sm:$0xff]
        %v505 = vld [vmem:[#allocation2 + $0x20] sm:$0xff]
        %v506 = vld [vmem:[#allocation2 + $0x28] sm:$0xff]
        %v507 = vld [vmem:[#allocation2 + $0x30] sm:$0xff]
        %v508 = vld [vmem:[#allocation2 + $0x38] sm:$0xff]
        %v509 = vld [vmem:[#allocation2 + $0x40] sm:$0xff]
        %v510 = vld [vmem:[#allocation2 + $0x48] sm:$0xff]
        %v511 = vld [vmem:[#allocation2 + $0x50] sm:$0xff]
        %v512 = vld [vmem:[#allocation2 + $0x58] sm:$0xff]
        %v513 = vld [vmem:[#allocation2 + $0x60] sm:$0xff]
        %v514 = vld [vmem:[#allocation2 + $0x68] sm:$0xff]
        %v515 = vld [vmem:[#allocation2 + $0x70] sm:$0xff]
        %v516 = vld [vmem:[#allocation2 + $0x78] sm:$0xff]
        %v517 = vld [vmem:[%s218] sm:$0xff]
        %v518 = vld [vmem:[%s218 + $0x8] sm:$0xff]
        %v519 = vld [vmem:[%s218 + $0x10] sm:$0xff]
        %v520 = vld [vmem:[%s218 + $0x18] sm:$0xff]
        %v521 = vld [vmem:[%s218 + $0x20] sm:$0xff]
        %v522 = vld [vmem:[%s218 + $0x28] sm:$0xff]
        %v523 = vld [vmem:[%s218 + $0x30] sm:$0xff]
        %v524 = vld [vmem:[%s218 + $0x38] sm:$0xff]
        %v525 = vld [vmem:[%s218 + $0x40] sm:$0xff]
        %v526 = vld [vmem:[%s218 + $0x48] sm:$0xff]
        %v527 = vld [vmem:[%s218 + $0x50] sm:$0xff]
        %v528 = vld [vmem:[%s218 + $0x58] sm:$0xff]
        %v529 = vld [vmem:[%s218 + $0x60] sm:$0xff]
        %v530 = vld [vmem:[%s218 + $0x68] sm:$0xff]
        %v531 = vld [vmem:[%s218 + $0x70] sm:$0xff]
        %v532 = vld [vmem:[%s218 + $0x78] sm:$0xff]
        %533 = vmatprep.subr.mxu0 0.0
        %534 = vmatpush1.msra.mxu0 %v498
        %535 = vmatprep.subr.mxu0 0.0
        %536 = vmatpush1.msra.mxu0 %v493
        %537 = vmatprep.subr.mxu0 0.0
        %538 = vmatpush1.msra.mxu0 %v488
        %539 = vmatprep.subr.mxu0 0.0
        %540 = vmatpush1.msra.mxu0 %v483
        %541 = vmatprep.subr.mxu0 0.0
        %542 = vmatpush1.msra.mxu0 %v478
        %543 = vmatprep.subr.mxu0 0.0
        %544 = vmatpush1.msra.mxu0 %v473
        %545 = vmatprep.subr.mxu0 0.0
        %546 = vmatpush1.msra.mxu0 %v468
        %547 = vmatprep.subr.mxu0 0.0
        %548 = vmatpush1.msra.mxu0 %v463
        %549 = vmatprep.subr.mxu0 0.0
        %550 = vmatpush1.msra.mxu0 %v458
        %551 = vmatprep.subr.mxu0 0.0
        %552 = vmatpush1.msra.mxu0 %v453
        %553 = vmatprep.subr.mxu0 0.0
        %554 = vmatpush1.msra.mxu0 %v448
        %555 = vmatprep.subr.mxu0 0.0
        %556 = vmatpush1.msra.mxu0 %v443
        %557 = vmatprep.subr.mxu0 0.0
        %558 = vmatpush1.msra.mxu0 %v438
        %559 = vmatprep.subr.mxu0 0.0
        %560 = vmatpush1.msra.mxu0 %v433
        %561 = vmatprep.subr.mxu0 0.0
        %562 = vmatpush1.msra.mxu0 %v428
        %563 = vmatprep.subr.mxu0 0.0
        %564 = vmatpush1.msra.mxu0 %v423
        %565 = vmatprep.subr.mxu0 0.0
        %566 = vmatpush2.msra.mxu0 0.0
        %567 = vmatprep.subr.mxu0 0.0
        %568 = vmatpush2.msra.mxu0 0.0
        %569 = vmatprep.subr.mxu0 0.0
        %570 = vmatpush2.msra.mxu0 0.0
        %571 = vmatprep.subr.mxu0 0.0
        %572 = vmatpush2.msra.mxu0 0.0
        %573 = vmatprep.subr.mxu0 0.0
        %574 = vmatpush2.msra.mxu0 0.0
        %575 = vmatprep.subr.mxu0 0.0
        %576 = vmatpush2.msra.mxu0 0.0
        %577 = vmatprep.subr.mxu0 0.0
        %578 = vmatpush2.msra.mxu0 0.0
        %579 = vmatprep.subr.mxu0 0.0
        %580 = vmatpush2.msra.mxu0 0.0
        %581 = vmatprep.subr.mxu0 0.0
        %582 = vmatpush2.msra.mxu0 0.0
        %583 = vmatprep.subr.mxu0 0.0
        %584 = vmatpush2.msra.mxu0 0.0
        %585 = vmatprep.subr.mxu0 0.0
        %586 = vmatpush2.msra.mxu0 0.0
        %587 = vmatprep.subr.mxu0 0.0
        %588 = vmatpush2.msra.mxu0 0.0
        %589 = vmatprep.subr.mxu0 0.0
        %590 = vmatpush2.msra.mxu0 0.0
        %591 = vmatprep.subr.mxu0 0.0
        %592 = vmatpush2.msra.mxu0 0.0
        %593 = vmatprep.subr.mxu0 0.0
        %594 = vmatpush2.msra.mxu0 0.0
        %595 = vmatprep.subr.mxu0 0.0
        %596 = vmatpush2.msra.mxu0 0.0
        %597 = vmatprep.mubr.f32.mxu0 0.0
        %598 = vmatmul.mubr.f32.gmra.mxu0 %v517
        %v599 = vpop.f32.mrf.mxu0
        %v600 = vadd.f32 0.0, %v599
        %v601 = vpop.f32.mrf.mxu0
        %602 = vmatprep.mubr.f32.mxu0 0.0
        %603 = vmatmul.mubr.f32.gmra.mxu0 %v518
        %v604 = vpop.f32.mrf.mxu0
        %v605 = vadd.f32 0.0, %v604
        %v606 = vpop.f32.mrf.mxu0
        %607 = vmatprep.mubr.f32.mxu0 0.0
        %608 = vmatmul.mubr.f32.gmra.mxu0 %v519
        %v609 = vpop.f32.mrf.mxu0
        %v610 = vadd.f32 0.0, %v609
        %v611 = vpop.f32.mrf.mxu0
        %612 = vmatprep.mubr.f32.mxu0 0.0
        %613 = vmatmul.mubr.f32.gmra.mxu0 %v520
        %v614 = vpop.f32.mrf.mxu0
        %v615 = vadd.f32 0.0, %v614
        %v616 = vpop.f32.mrf.mxu0
        %617 = vmatprep.mubr.f32.mxu0 0.0
        %618 = vmatmul.mubr.f32.gmra.mxu0 %v521
        %v619 = vpop.f32.mrf.mxu0
        %v620 = vadd.f32 0.0, %v619
        %v621 = vpop.f32.mrf.mxu0
        %622 = vmatprep.mubr.f32.mxu0 0.0
        %623 = vmatmul.mubr.f32.gmra.mxu0 %v522
        %v624 = vpop.f32.mrf.mxu0
        %v625 = vadd.f32 0.0, %v624
        %v626 = vpop.f32.mrf.mxu0
        %627 = vmatprep.mubr.f32.mxu0 0.0
        %628 = vmatmul.mubr.f32.gmra.mxu0 %v523
        %v629 = vpop.f32.mrf.mxu0
        %v630 = vadd.f32 0.0, %v629
        %v631 = vpop.f32.mrf.mxu0
        %632 = vmatprep.mubr.f32.mxu0 0.0
        %633 = vmatmul.mubr.f32.gmra.mxu0 %v524
        %v634 = vpop.f32.mrf.mxu0
        %v635 = vadd.f32 0.0, %v634
        %v636 = vpop.f32.mrf.mxu0
        %637 = vmatprep.mubr.f32.mxu0 0.0
        %638 = vmatmul.mubr.f32.gmra.mxu0 %v525
        %v639 = vpop.f32.mrf.mxu0
        %v640 = vadd.f32 0.0, %v639
        %v641 = vpop.f32.mrf.mxu0
        %642 = vmatprep.mubr.f32.mxu0 0.0
        %643 = vmatmul.mubr.f32.gmra.mxu0 %v526
        %v644 = vpop.f32.mrf.mxu0
        %v645 = vadd.f32 0.0, %v644
        %v646 = vpop.f32.mrf.mxu0
        %647 = vmatprep.mubr.f32.mxu0 0.0
        %648 = vmatmul.mubr.f32.gmra.mxu0 %v527
        %v649 = vpop.f32.mrf.mxu0
        %v650 = vadd.f32 0.0, %v649
        %v651 = vpop.f32.mrf.mxu0
        %652 = vmatprep.mubr.f32.mxu0 0.0
        %653 = vmatmul.mubr.f32.gmra.mxu0 %v528
        %v654 = vpop.f32.mrf.mxu0
        %v655 = vadd.f32 0.0, %v654
        %v656 = vpop.f32.mrf.mxu0
        %657 = vmatprep.mubr.f32.mxu0 0.0
        %658 = vmatmul.mubr.f32.gmra.mxu0 %v529
        %v659 = vpop.f32.mrf.mxu0
        %v660 = vadd.f32 0.0, %v659
        %v661 = vpop.f32.mrf.mxu0
        %662 = vmatprep.mubr.f32.mxu0 0.0
        %663 = vmatmul.mubr.f32.gmra.mxu0 %v530
        %v664 = vpop.f32.mrf.mxu0
        %v665 = vadd.f32 0.0, %v664
        %v666 = vpop.f32.mrf.mxu0
        %667 = vmatprep.mubr.f32.mxu0 0.0
        %668 = vmatmul.mubr.f32.gmra.mxu0 %v531
        %v669 = vpop.f32.mrf.mxu0
        %v670 = vadd.f32 0.0, %v669
        %v671 = vpop.f32.mrf.mxu0
        %672 = vmatprep.mubr.f32.mxu0 0.0
        %673 = vmatmul.mubr.f32.gmra.mxu0 %v532
        %v674 = vpop.f32.mrf.mxu0
        %v675 = vadd.f32 0.0, %v674
        %v676 = vpop.f32.mrf.mxu0
        %677 = vdwg.mxu0
        %v678 = vadd.f32 %v501, %v600
        %v679 = vadd.f32 %v502, %v605
        %v680 = vadd.f32 %v503, %v610
        %v681 = vadd.f32 %v504, %v615
        %v682 = vadd.f32 %v505, %v620
        %v683 = vadd.f32 %v506, %v625
        %v684 = vadd.f32 %v507, %v630
        %v685 = vadd.f32 %v508, %v635
        %v686 = vadd.f32 %v509, %v640
        %v687 = vadd.f32 %v510, %v645
        %v688 = vadd.f32 %v511, %v650
        %v689 = vadd.f32 %v512, %v655
        %v690 = vadd.f32 %v513, %v660
        %v691 = vadd.f32 %v514, %v665
        %v692 = vadd.f32 %v515, %v670
        %v693 = vadd.f32 %v516, %v675
        %694 = vst [vmem:[#allocation2] sm:$0xff] %v678
        %695 = vst [vmem:[#allocation2 + $0x8] sm:$0xff] %v679
        %696 = vst [vmem:[#allocation2 + $0x10] sm:$0xff] %v680
        %697 = vst [vmem:[#allocation2 + $0x18] sm:$0xff] %v681
        %698 = vst [vmem:[#allocation2 + $0x20] sm:$0xff] %v682
        %699 = vst [vmem:[#allocation2 + $0x28] sm:$0xff] %v683
        %700 = vst [vmem:[#allocation2 + $0x30] sm:$0xff] %v684
        %701 = vst [vmem:[#allocation2 + $0x38] sm:$0xff] %v685
        %702 = vst [vmem:[#allocation2 + $0x40] sm:$0xff] %v686
        %703 = vst [vmem:[#allocation2 + $0x48] sm:$0xff] %v687
        %704 = vst [vmem:[#allocation2 + $0x50] sm:$0xff] %v688
        %705 = vst [vmem:[#allocation2 + $0x58] sm:$0xff] %v689
        %706 = vst [vmem:[#allocation2 + $0x60] sm:$0xff] %v690
        %707 = vst [vmem:[#allocation2 + $0x68] sm:$0xff] %v691
        %708 = vst [vmem:[#allocation2 + $0x70] sm:$0xff] %v692
        %709 = vst [vmem:[#allocation2 + $0x78] sm:$0xff] %v693
        %p710 = scmp.eq.s32.totalorder %s26, 2
        // Predicated region
        $region45: #{tpu_custom_call.1} parent=35 // pred_check
          %p711 = pneg %p710
        $region46: #{tpu_custom_call.1} parent=35 // pred_check_branch
          %713 = sbr.rel (%p711) target = $region48
        $region47: #{tpu_custom_call.1} parent=35 // pred_region
          %v714 = vld [vmem:[#allocation2] sm:$0xff]
          %v715 = vld [vmem:[#allocation2 + $0x8] sm:$0xff]
          %v716 = vld [vmem:[#allocation2 + $0x10] sm:$0xff]
          %v717 = vld [vmem:[#allocation2 + $0x18] sm:$0xff]
          %v718 = vld [vmem:[#allocation2 + $0x20] sm:$0xff]
          %v719 = vld [vmem:[#allocation2 + $0x28] sm:$0xff]
          %v720 = vld [vmem:[#allocation2 + $0x30] sm:$0xff]
          %v721 = vld [vmem:[#allocation2 + $0x38] sm:$0xff]
          %v722 = vld [vmem:[#allocation2 + $0x40] sm:$0xff]
          %v723 = vld [vmem:[#allocation2 + $0x48] sm:$0xff]
          %v724 = vld [vmem:[#allocation2 + $0x50] sm:$0xff]
          %v725 = vld [vmem:[#allocation2 + $0x58] sm:$0xff]
          %v726 = vld [vmem:[#allocation2 + $0x60] sm:$0xff]
          %v727 = vld [vmem:[#allocation2 + $0x68] sm:$0xff]
          %v728 = vld [vmem:[#allocation2 + $0x70] sm:$0xff]
          %v729 = vld [vmem:[#allocation2 + $0x78] sm:$0xff]
          %730 = vst [vmem:[%s247] sm:$0xff] %v714
          %731 = vst [vmem:[%s247 + $0x8] sm:$0xff] %v715
          %732 = vst [vmem:[%s247 + $0x10] sm:$0xff] %v716
          %733 = vst [vmem:[%s247 + $0x18] sm:$0xff] %v717
          %734 = vst [vmem:[%s247 + $0x20] sm:$0xff] %v718
          %735 = vst [vmem:[%s247 + $0x28] sm:$0xff] %v719
          %736 = vst [vmem:[%s247 + $0x30] sm:$0xff] %v720
          %737 = vst [vmem:[%s247 + $0x38] sm:$0xff] %v721
          %738 = vst [vmem:[%s247 + $0x40] sm:$0xff] %v722
          %739 = vst [vmem:[%s247 + $0x48] sm:$0xff] %v723
          %740 = vst [vmem:[%s247 + $0x50] sm:$0xff] %v724
          %741 = vst [vmem:[%s247 + $0x58] sm:$0xff] %v725
          %742 = vst [vmem:[%s247 + $0x60] sm:$0xff] %v726
          %743 = vst [vmem:[%s247 + $0x68] sm:$0xff] %v727
          %744 = vst [vmem:[%s247 + $0x70] sm:$0xff] %v728
          %745 = vst [vmem:[%s247 + $0x78] sm:$0xff] %v729
        $region48: #{tpu_custom_call.1} parent=35 // pred_fallthru
          _
        %s746 = sand.u32 %s137, 1
        %s747 = scalar_lea.sflag [#allocation5], %s746
        %s748 = sand.u32 %s137, 1
        %s749 = smul.addr %s748, 128
        %s750 = scalar_lea.vmem [#allocation6], %s749
        // Predicated region
        $region49: #{tpu_custom_call.1} parent=35 // pred_check
          %p751 = pneg %p147
        $region50: #{tpu_custom_call.1} parent=35 // pred_check_branch
          %753 = sbr.rel (%p751) target = $region52
        $region51: #{tpu_custom_call.1} parent=35 // pred_region
          %s754 = smul.u32 16, %s25
          %s756 = ssub.s32 2048, 2048
          %757 = vsyncadd %s747, %s756
          %s758 = smul.addr %s754, 128
          %s759 = scalar_lea.hbm %s4, %s758
          %s760 = sshll.u32 %s750, 4
          %s761 = int_to_ptr.vmem [resolvable:$true] %s760
          %766 = dma.vmem_to_hbm [thread:$0]  %s761, 2048, %s759, %s747, 128, 128, 8
        $region52: #{tpu_custom_call.1} parent=35 // pred_fallthru
          _
      $region36: #{tpu_custom_call.1} parent=5 // pred_fallthru
        _
      %p767 = scmp.le.s32.totalorder 2, %s16
      // Predicated region
      $region53: #{tpu_custom_call.1} parent=5 // pred_check
        %p768 = pneg %p767
      $region54: #{tpu_custom_call.1} parent=5 // pred_check_branch
        %770 = sbr.rel (%p768) target = $region56
      $region55: #{tpu_custom_call.1} parent=5 // pred_region
        %s771 = ssub.s32 %s16, 2
        // Predicated region
        $region57: #{tpu_custom_call.1} parent=55 // pred_check
          %p772 = pneg %p153
        $region58: #{tpu_custom_call.1} parent=55 // pred_check_branch
          %774 = sbr.rel (%p772) target = $region60
        $region59: #{tpu_custom_call.1} parent=55 // pred_region
          %s775 = sand.u32 %s138, 1
          %s776 = scalar_lea.sflag [#allocation5], %s775
          %s777 = sand.u32 %s138, 1
          %s778 = smul.addr %s777, 128
          %s779 = scalar_lea.vmem [#allocation6], %s778
          %780 = dma.done %s776, 2048
        $region60: #{tpu_custom_call.1} parent=55 // pred_fallthru
          _
      $region56: #{tpu_custom_call.1} parent=5 // pred_fallthru
        _
    $region6: #{tpu_custom_call.1} parent=1 // loop_footer
      %s20 = sadd.s32 1, %s16
    $region7: #{tpu_custom_call.1} parent=1 // loop_footer_branch
      %15 = sbr.rel target = $region3
    $region8: #{tpu_custom_call.1} parent=1 // loop_exit
      _
    %781 = vsyncpa [#allocation4], 1
    %s782 = scalar_lea.sflag [#allocation4], 1
    %783 = vsyncpa %s782, 1
    %784 = vsyncpa [#allocation5], 1
    %s785 = scalar_lea.sflag [#allocation5], 1
    %786 = vsyncpa %s785, 1

</llo_original>
